<compile_context>
chip_gen: v6e
topology: v6e:2x2x1
jax: 0.10.0
libtpu: 0.0.40
codegen_flags: <defaults>
</compile_context>

<pallas_src>
import functools

import jax
import jax.numpy as jnp
from jax.experimental import pallas as pl
from jax.experimental.pallas import tpu as pltpu


def _round_up(x, m):
    return (x + m - 1) // m * m


def _device_kind():
    try:
        return jax.devices()[0].device_kind.lower()
    except Exception:
        return ""


def _vmem_capacity_bytes():
    """Physical VMEM per TensorCore; conservative 64 MiB if unknown (v7x-safe)."""
    try:
        info = pltpu.get_tpu_info()
        cap = getattr(info, "vmem_capacity_bytes", None)
        if cap:
            return int(cap)
    except Exception:
        pass
    kind = _device_kind()
    if ("v5" in kind) or ("v6" in kind):
        return 128 * 1024 * 1024
    return 64 * 1024 * 1024


def _bf16_exp_ok():
    # Packed bf16 EUP exists on v6e/v7x; v5e has no bf16 VPU/EUP (would only add casts).
    kind = _device_kind()
    return ("v6" in kind) or ("v7" in kind)


# ----------------------------------------------------------------------------- kernels


def _basis_chunk(x_ref, gv, inv_h, exp_dtype, mxu_dtype):
    # Re-load x per grid point: bounds the f32 live range to one (TB, IN_pad) tile
    # (vld slot is cheap: 3/cycle) instead of holding x across all G iterations.
    x = x_ref[...].astype(jnp.float32)
    z = (x - gv) * inv_h
    nz2 = -(z * z)
    # exp in bf16 on v6e/v7x (~2x EUP throughput); f32 on v5e or when the MXU path is f32.
    return jnp.exp(nz2.astype(exp_dtype)).astype(mxu_dtype)


def _rbf_kernel_resident(x_ref, w_ref, o_ref, *, grid_vals, inv_h, in_pad,
                         exp_dtype, mxu_dtype):
    # x_ref: (TB, IN_pad); w_ref: (G*IN_pad, TN) resident in VMEM; o_ref: (TB, TN).
    # Per grid point: EUP exp chunk, then MXU accumulate -> EUP/MXU work interleaves.
    acc = jnp.zeros(o_ref.shape, jnp.float32)
    for g, gv in enumerate(grid_vals):
        chunk = _basis_chunk(x_ref, gv, inv_h, exp_dtype, mxu_dtype)
        acc = acc + jnp.dot(chunk, w_ref[g * in_pad:(g + 1) * in_pad, :],
                            preferred_element_type=jnp.float32)
    o_ref[...] = acc.astype(o_ref.dtype)


def _rbf_kernel_tiled(x_ref, w_ref, o_ref, slab_ref, *, grid_vals, inv_h, in_pad,
                      exp_dtype, mxu_dtype):
    # NOTE: the basis slab built at j == 0 is carried across the OUT tiles of one batch
    # tile.  This is only correct because the OUT axis (axis 1) is the innermost,
    # sequentially iterated ("arbitrary") grid axis -- do NOT reorder the grid or mark
    # axis 1 "parallel".
    j = pl.program_id(1)

    @pl.when(j == 0)
    def _():
        # Build the slab per grid point while interleaving the first OUT tile's matmuls
        # with the EUP exp work (no serialized exp burst ahead of the matmul stream).
        acc = jnp.zeros(o_ref.shape, jnp.float32)
        for g, gv in enumerate(grid_vals):
            chunk = _basis_chunk(x_ref, gv, inv_h, exp_dtype, mxu_dtype)
            slab_ref[:, g * in_pad:(g + 1) * in_pad] = chunk
            acc = acc + jnp.dot(chunk, w_ref[g * in_pad:(g + 1) * in_pad, :],
                                preferred_element_type=jnp.float32)
        o_ref[...] = acc.astype(o_ref.dtype)

    @pl.when(j > 0)
    def _():
        # Later OUT tiles reuse the slab: one deep-K (G*IN_pad) MXU matmul.
        o_ref[...] = jnp.dot(slab_ref[...], w_ref[...],
                             preferred_element_type=jnp.float32).astype(o_ref.dtype)


# ------------------------------------------------------------------------------ wrapper


def prepare_spline_weight(spline_weight, in_features, num_grids, *,
                          in_pad, out_pad, dtype=jnp.bfloat16):
    """(IN*G, OUT) flat weight (row = i*G + g) -> padded (G*IN_pad, OUT_pad) with
    row = g*IN_pad + i, matching the kernel's basis layout.

    The zero rows for padded input features are REQUIRED for correctness (padded x
    columns produce nonzero basis values).  Hoist / cache the result outside the hot
    path: it copies the whole weight."""
    out_features = spline_weight.shape[1]
    w = spline_weight.reshape(in_features, num_grids, out_features)
    w = jnp.transpose(w, (1, 0, 2))                                    # (G, IN, OUT)
    w = jnp.pad(w, ((0, 0),
                    (0, in_pad - in_features),
                    (0, out_pad - out_features)))
    return w.reshape(num_grids * in_pad, out_pad).astype(dtype)


def rbf_linear_prepared(x, w_prep, *, grid_min, grid_max, num_grids, out_features,
                        block_b=None, block_n=None):
    """x: (B, in_features); w_prep: output of prepare_spline_weight."""
    B, in_features = x.shape
    mxu_dtype = w_prep.dtype
    is_bf16 = mxu_dtype == jnp.bfloat16

    in_pad = _round_up(in_features, 128)
    out_pad = w_prep.shape[1]
    assert w_prep.shape[0] == num_grids * in_pad, (
        "w_prep row padding must match in_pad: padded input columns produce nonzero "
        "basis values and rely on the corresponding weight rows being zero.")
    assert out_pad % 128 == 0 and out_pad >= out_features

    kind = _device_kind()
    vmem_bytes = _vmem_capacity_bytes()
    budget = int(vmem_bytes * 0.6)          # leave headroom for compiler scratch

    w_item = jnp.dtype(mxu_dtype).itemsize
    x_item = jnp.dtype(x.dtype).itemsize

    # --- batch tile: fill the MXU (256 rows on v6e/v7x, 128 on v5e), bf16-native
    # --- sublane multiple (16), but don't over-pad tiny batches.
    sub = 16 if is_bf16 else 8
    if block_b is None:
        block_b = 128 if ("v5" in kind or "v4" in kind) else 256
    block_b = max(sub, _round_up(min(block_b, _round_up(B, sub)), sub))
    b_pad = _round_up(B, block_b)
    nb = b_pad // block_b

    # --- VMEM footprints (Pallas double-buffers every BlockSpec'd operand) ----------
    def _resident_footprint(bn):
        return (2 * num_grids * in_pad * bn * w_item       # W block(s)
                + 2 * block_b * in_pad * x_item            # x tiles
                + 2 * block_b * bn * x_item                # out tiles
                + 2 * block_b * bn * 4                     # f32 accumulator (+spill)
                + 2 * block_b * in_pad * 4)                # basis-chunk headroom

    def _tiled_footprint(bn):
        return (block_b * num_grids * in_pad * w_item      # basis slab scratch
                + 2 * num_grids * in_pad * bn * w_item     # W tiles
                + 2 * block_b * in_pad * x_item
                + 2 * block_b * bn * x_item
                + 2 * block_b * bn * 4)

    if block_n is not None:
        block_n = min(block_n, out_pad)
        assert block_n % 128 == 0 and out_pad % block_n == 0
    force_tiled = (block_n is not None) and (block_n < out_pad)

    resident = (not force_tiled) and (_resident_footprint(out_pad) <= budget)

    if resident:
        bn = out_pad
        # v7x has 2 TensorCores: with a single batch tile, split OUT into two "parallel"
        # blocks so the second core isn't idle (basis recomputed per core -- cheap).
        if (block_n is None and nb == 1 and out_pad % 256 == 0 and "v7" in kind):
            bn = out_pad // 2
        footprint = _resident_footprint(bn)
    else:
        if force_tiled:
            bn = block_n
        else:
            bn = 128
            for cand in (512, 256, 128):
                if cand <= out_pad and out_pad % cand == 0 and _tiled_footprint(cand) <= budget:
                    bn = cand
                    break
        footprint = _tiled_footprint(bn)

    vmem_limit = int(min(vmem_bytes - (2 << 20), max(footprint + (8 << 20), 32 << 20)))

    # --- pad x (only when needed).  Callers with pre-aligned shapes pay nothing. ------
    x_pad = x
    if (b_pad, in_pad) != (B, in_features):
        x_pad = jnp.pad(x, ((0, b_pad - B), (0, in_pad - in_features)))

    # Grid points / bandwidth as static Python floats (baked into the kernel).
    step = (float(grid_max) - float(grid_min)) / float(num_grids - 1)
    grid_vals = tuple(float(grid_min) + step * g for g in range(num_grids))
    inv_h = 1.0 / step

    exp_dtype = jnp.bfloat16 if (is_bf16 and _bf16_exp_ok()) else jnp.float32

    grid = (nb, out_pad // bn)
    in_specs = [
        pl.BlockSpec((block_b, in_pad), lambda i, j: (i, 0)),
        # Constant block index (resident path) => the weight is DMA'd from HBM once and
        # stays resident in VMEM for every batch tile.
        pl.BlockSpec((num_grids * in_pad, bn), lambda i, j: (0, j)),
    ]
    out_spec = pl.BlockSpec((block_b, bn), lambda i, j: (i, j))

    if resident:
        kernel = functools.partial(_rbf_kernel_resident, grid_vals=grid_vals,
                                   inv_h=inv_h, in_pad=in_pad,
                                   exp_dtype=exp_dtype, mxu_dtype=mxu_dtype)
        scratch = []
        semantics = ("parallel", "parallel")
    else:
        kernel = functools.partial(_rbf_kernel_tiled, grid_vals=grid_vals,
                                   inv_h=inv_h, in_pad=in_pad,
                                   exp_dtype=exp_dtype, mxu_dtype=mxu_dtype)
        scratch = [pltpu.VMEM((block_b, num_grids * in_pad), mxu_dtype)]
        # OUT axis must stay innermost + "arbitrary": the slab scratch is carried across it.
        semantics = ("parallel", "arbitrary")

    w_bytes_total = num_grids * in_pad * out_pad * w_item
    cost = pl.CostEstimate(
        flops=2 * b_pad * num_grids * in_pad * out_pad,
        transcendentals=b_pad * num_grids * in_pad * ((out_pad // bn) if resident else 1),
        bytes_accessed=(b_pad * in_pad * x_item
                        + (w_bytes_total if resident else w_bytes_total * nb)
                        + b_pad * out_pad * x_item),
    )

    out = pl.pallas_call(
        kernel,
        out_shape=jax.ShapeDtypeStruct((b_pad, out_pad), x.dtype),
        grid_spec=pltpu.PrefetchScalarGridSpec(
            num_scalar_prefetch=0,
            grid=grid,
            in_specs=in_specs,
            out_specs=out_spec,
            scratch_shapes=scratch,
        ),
        compiler_params=pltpu.CompilerParams(
            dimension_semantics=semantics,
            vmem_limit_bytes=vmem_limit,
        ),
        cost_estimate=cost,
    )(x_pad, w_prep)

    if (b_pad, out_pad) == (B, out_features):
        return out
    return out[:B, :out_features]


def rbf_linear(x, spline_weight, *, grid_min=-2.0, grid_max=2.0, num_grids=8,
               block_b=None, block_n=None, mxu_dtype=jnp.bfloat16):
    """Convenience wrapper matching RBFLinear.forward.
    For repeated calls with the same weights, hoist prepare_spline_weight()."""
    B, in_features = x.shape
    out_features = spline_weight.shape[1]
    assert spline_weight.shape[0] == in_features * num_grids

    in_pad = _round_up(in_features, 128)
    out_pad = _round_up(out_features, 128)
    w_prep = prepare_spline_weight(spline_weight, in_features, num_grids,
                                   in_pad=in_pad, out_pad=out_pad, dtype=mxu_dtype)
    return rbf_linear_prepared(x, w_prep, grid_min=grid_min, grid_max=grid_max,
                               num_grids=num_grids, out_features=out_features,
                               block_b=block_b, block_n=block_n)


def rbf_linear_ref(x, spline_weight, *, grid_min=-2.0, grid_max=2.0, num_grids=8):
    grid = jnp.linspace(grid_min, grid_max, num_grids)
    h = (grid_max - grid_min) / (num_grids - 1)
    basis = jnp.exp(-(((x[..., None] - grid) / h) ** 2))          # (B, IN, G)
    return basis.reshape(x.shape[0], -1) @ spline_weight


if __name__ == "__main__":
    key = jax.random.PRNGKey(0)

    def run_case(tag, B, in_features, out_features, num_grids, *, mxu_dtype, tol, **kwargs):
        k = jax.random.fold_in(key, B * 10007 + in_features * 101 + out_features)
        kx, kw = jax.random.split(k)
        x = jax.random.normal(kx, (B, in_features), dtype=jnp.float32)
        w = (jax.random.normal(kw, (in_features * num_grids, out_features),
                               dtype=jnp.float32) * 0.1)
        ref = rbf_linear_ref(x, w, num_grids=num_grids)
        out = rbf_linear(x, w, num_grids=num_grids, mxu_dtype=mxu_dtype, **kwargs)
        out = jax.block_until_ready(out)
        assert out.shape == (B, out_features), f"{tag}: bad shape {out.shape}"
        assert jnp.allclose(out, ref, atol=tol, rtol=tol), f"{tag}: mismatch vs reference"

    # Small demo shape -> resident-weight path (single batch tile, single OUT block).
    run_case("small_bf16", 8, 32, 16, 8, mxu_dtype=jnp.bfloat16, tol=5e-2)
    run_case("small_f32", 8, 32, 16, 8, mxu_dtype=jnp.float32, tol=1e-2)

    # Forced OUT-tiled fallback path: multiple batch tiles + slab reuse across OUT tiles,
    # ragged batch/feature/output padding all exercised.
    run_case("tiled_bf16", 40, 96, 200, 8, mxu_dtype=jnp.bfloat16, tol=5e-2,
             block_b=16, block_n=128)
    run_case("tiled_f32", 40, 96, 200, 8, mxu_dtype=jnp.float32, tol=1e-2,
             block_b=16, block_n=128)

    print("KERNEL_OK")
</pallas_src>

<mosaic_0001>
module attributes {stable_mosaic.version = 11 : i64} {
  func.func @_rbf_kernel_resident(%arg0: i32, %arg1: i32, %arg2: memref<16x128xf32, #tpu.memory_space<vmem>>, %arg3: memref<1024x128xbf16, #tpu.memory_space<vmem>>, %arg4: memref<16x128xf32, #tpu.memory_space<vmem>>) attributes {dimension_semantics = [#tpu.dimension_semantics<parallel>, #tpu.dimension_semantics<parallel>], iteration_bounds = array<i64: 1, 1>, scalar_prefetch = 0 : i64, scratch_operands = 0 : i64, tpu.core_type = #tpu.core_type<tc>, window_params = [{transform_indices = @transform_0, window_bounds = array<i64: 16, 128>}, {transform_indices = @transform_1, window_bounds = array<i64: 1024, 128>}, {transform_indices = @transform_2, window_bounds = array<i64: 16, 128>}]} {
    %cst = arith.constant 0.000000e+00 : f32
    %0 = vector.broadcast %cst : f32 to vector<16x128xf32>
    %c0 = arith.constant 0 : index
    %c0_0 = arith.constant 0 : index
    %1 = vector.load %arg2[%c0, %c0_0] : memref<16x128xf32, #tpu.memory_space<vmem>>, vector<16x128xf32>
    %cst_1 = arith.constant -2.000000e+00 : f32
    %2 = vector.broadcast %cst_1 : f32 to vector<16x128xf32>
    %3 = arith.subf %1, %2 : vector<16x128xf32>
    %cst_2 = arith.constant 1.750000e+00 : f32
    %4 = vector.broadcast %cst_2 : f32 to vector<16x128xf32>
    %5 = arith.mulf %3, %4 : vector<16x128xf32>
    %6 = arith.mulf %5, %5 : vector<16x128xf32>
    %cst_3 = arith.constant 0.000000e+00 : f32
    %7 = vector.broadcast %cst_3 : f32 to vector<16x128xf32>
    %8 = arith.subf %7, %6 : vector<16x128xf32>
    %9 = math.exp %8 : vector<16x128xf32>
    %10 = arith.truncf %9 : vector<16x128xf32> to vector<16x128xbf16>
    %c0_4 = arith.constant 0 : index
    %c0_5 = arith.constant 0 : index
    %11 = vector.load %arg3[%c0_4, %c0_5] : memref<1024x128xbf16, #tpu.memory_space<vmem>>, vector<128x128xbf16>
    %cst_6 = arith.constant dense<0.000000e+00> : vector<16x128xf32>
    %12 = tpu.matmul %10, %11, %cst_6 {dimension_numbers = #tpu.dot_dimension_numbers<[1], [0], [0], [1], [0, 0, 1, 1], [], []>} : vector<16x128xbf16>, vector<128x128xbf16>, vector<16x128xf32> -> vector<16x128xf32>
    %13 = arith.addf %0, %12 : vector<16x128xf32>
    %c0_7 = arith.constant 0 : index
    %c0_8 = arith.constant 0 : index
    %14 = vector.load %arg2[%c0_7, %c0_8] : memref<16x128xf32, #tpu.memory_space<vmem>>, vector<16x128xf32>
    %cst_9 = arith.constant -1.42857146 : f32
    %15 = vector.broadcast %cst_9 : f32 to vector<16x128xf32>
    %16 = arith.subf %14, %15 : vector<16x128xf32>
    %cst_10 = arith.constant 1.750000e+00 : f32
    %17 = vector.broadcast %cst_10 : f32 to vector<16x128xf32>
    %18 = arith.mulf %16, %17 : vector<16x128xf32>
    %19 = arith.mulf %18, %18 : vector<16x128xf32>
    %cst_11 = arith.constant 0.000000e+00 : f32
    %20 = vector.broadcast %cst_11 : f32 to vector<16x128xf32>
    %21 = arith.subf %20, %19 : vector<16x128xf32>
    %22 = math.exp %21 : vector<16x128xf32>
    %23 = arith.truncf %22 : vector<16x128xf32> to vector<16x128xbf16>
    %c128 = arith.constant 128 : index
    %c0_12 = arith.constant 0 : index
    %24 = vector.load %arg3[%c128, %c0_12] : memref<1024x128xbf16, #tpu.memory_space<vmem>>, vector<128x128xbf16>
    %cst_13 = arith.constant dense<0.000000e+00> : vector<16x128xf32>
    %25 = tpu.matmul %23, %24, %cst_13 {dimension_numbers = #tpu.dot_dimension_numbers<[1], [0], [0], [1], [0, 0, 1, 1], [], []>} : vector<16x128xbf16>, vector<128x128xbf16>, vector<16x128xf32> -> vector<16x128xf32>
    %26 = arith.addf %13, %25 : vector<16x128xf32>
    %c0_14 = arith.constant 0 : index
    %c0_15 = arith.constant 0 : index
    %27 = vector.load %arg2[%c0_14, %c0_15] : memref<16x128xf32, #tpu.memory_space<vmem>>, vector<16x128xf32>
    %cst_16 = arith.constant -0.857142865 : f32
    %28 = vector.broadcast %cst_16 : f32 to vector<16x128xf32>
    %29 = arith.subf %27, %28 : vector<16x128xf32>
    %cst_17 = arith.constant 1.750000e+00 : f32
    %30 = vector.broadcast %cst_17 : f32 to vector<16x128xf32>
    %31 = arith.mulf %29, %30 : vector<16x128xf32>
    %32 = arith.mulf %31, %31 : vector<16x128xf32>
    %cst_18 = arith.constant 0.000000e+00 : f32
    %33 = vector.broadcast %cst_18 : f32 to vector<16x128xf32>
    %34 = arith.subf %33, %32 : vector<16x128xf32>
    %35 = math.exp %34 : vector<16x128xf32>
    %36 = arith.truncf %35 : vector<16x128xf32> to vector<16x128xbf16>
    %c256 = arith.constant 256 : index
    %c0_19 = arith.constant 0 : index
    %37 = vector.load %arg3[%c256, %c0_19] : memref<1024x128xbf16, #tpu.memory_space<vmem>>, vector<128x128xbf16>
    %cst_20 = arith.constant dense<0.000000e+00> : vector<16x128xf32>
    %38 = tpu.matmul %36, %37, %cst_20 {dimension_numbers = #tpu.dot_dimension_numbers<[1], [0], [0], [1], [0, 0, 1, 1], [], []>} : vector<16x128xbf16>, vector<128x128xbf16>, vector<16x128xf32> -> vector<16x128xf32>
    %39 = arith.addf %26, %38 : vector<16x128xf32>
    %c0_21 = arith.constant 0 : index
    %c0_22 = arith.constant 0 : index
    %40 = vector.load %arg2[%c0_21, %c0_22] : memref<16x128xf32, #tpu.memory_space<vmem>>, vector<16x128xf32>
    %cst_23 = arith.constant -0.285714298 : f32
    %41 = vector.broadcast %cst_23 : f32 to vector<16x128xf32>
    %42 = arith.subf %40, %41 : vector<16x128xf32>
    %cst_24 = arith.constant 1.750000e+00 : f32
    %43 = vector.broadcast %cst_24 : f32 to vector<16x128xf32>
    %44 = arith.mulf %42, %43 : vector<16x128xf32>
    %45 = arith.mulf %44, %44 : vector<16x128xf32>
    %cst_25 = arith.constant 0.000000e+00 : f32
    %46 = vector.broadcast %cst_25 : f32 to vector<16x128xf32>
    %47 = arith.subf %46, %45 : vector<16x128xf32>
    %48 = math.exp %47 : vector<16x128xf32>
    %49 = arith.truncf %48 : vector<16x128xf32> to vector<16x128xbf16>
    %c384 = arith.constant 384 : index
    %c0_26 = arith.constant 0 : index
    %50 = vector.load %arg3[%c384, %c0_26] : memref<1024x128xbf16, #tpu.memory_space<vmem>>, vector<128x128xbf16>
    %cst_27 = arith.constant dense<0.000000e+00> : vector<16x128xf32>
    %51 = tpu.matmul %49, %50, %cst_27 {dimension_numbers = #tpu.dot_dimension_numbers<[1], [0], [0], [1], [0, 0, 1, 1], [], []>} : vector<16x128xbf16>, vector<128x128xbf16>, vector<16x128xf32> -> vector<16x128xf32>
    %52 = arith.addf %39, %51 : vector<16x128xf32>
    %c0_28 = arith.constant 0 : index
    %c0_29 = arith.constant 0 : index
    %53 = vector.load %arg2[%c0_28, %c0_29] : memref<16x128xf32, #tpu.memory_space<vmem>>, vector<16x128xf32>
    %cst_30 = arith.constant 0.285714298 : f32
    %54 = vector.broadcast %cst_30 : f32 to vector<16x128xf32>
    %55 = arith.subf %53, %54 : vector<16x128xf32>
    %cst_31 = arith.constant 1.750000e+00 : f32
    %56 = vector.broadcast %cst_31 : f32 to vector<16x128xf32>
    %57 = arith.mulf %55, %56 : vector<16x128xf32>
    %58 = arith.mulf %57, %57 : vector<16x128xf32>
    %cst_32 = arith.constant 0.000000e+00 : f32
    %59 = vector.broadcast %cst_32 : f32 to vector<16x128xf32>
    %60 = arith.subf %59, %58 : vector<16x128xf32>
    %61 = math.exp %60 : vector<16x128xf32>
    %62 = arith.truncf %61 : vector<16x128xf32> to vector<16x128xbf16>
    %c512 = arith.constant 512 : index
    %c0_33 = arith.constant 0 : index
    %63 = vector.load %arg3[%c512, %c0_33] : memref<1024x128xbf16, #tpu.memory_space<vmem>>, vector<128x128xbf16>
    %cst_34 = arith.constant dense<0.000000e+00> : vector<16x128xf32>
    %64 = tpu.matmul %62, %63, %cst_34 {dimension_numbers = #tpu.dot_dimension_numbers<[1], [0], [0], [1], [0, 0, 1, 1], [], []>} : vector<16x128xbf16>, vector<128x128xbf16>, vector<16x128xf32> -> vector<16x128xf32>
    %65 = arith.addf %52, %64 : vector<16x128xf32>
    %c0_35 = arith.constant 0 : index
    %c0_36 = arith.constant 0 : index
    %66 = vector.load %arg2[%c0_35, %c0_36] : memref<16x128xf32, #tpu.memory_space<vmem>>, vector<16x128xf32>
    %cst_37 = arith.constant 0.857142865 : f32
    %67 = vector.broadcast %cst_37 : f32 to vector<16x128xf32>
    %68 = arith.subf %66, %67 : vector<16x128xf32>
    %cst_38 = arith.constant 1.750000e+00 : f32
    %69 = vector.broadcast %cst_38 : f32 to vector<16x128xf32>
    %70 = arith.mulf %68, %69 : vector<16x128xf32>
    %71 = arith.mulf %70, %70 : vector<16x128xf32>
    %cst_39 = arith.constant 0.000000e+00 : f32
    %72 = vector.broadcast %cst_39 : f32 to vector<16x128xf32>
    %73 = arith.subf %72, %71 : vector<16x128xf32>
    %74 = math.exp %73 : vector<16x128xf32>
    %75 = arith.truncf %74 : vector<16x128xf32> to vector<16x128xbf16>
    %c640 = arith.constant 640 : index
    %c0_40 = arith.constant 0 : index
    %76 = vector.load %arg3[%c640, %c0_40] : memref<1024x128xbf16, #tpu.memory_space<vmem>>, vector<128x128xbf16>
    %cst_41 = arith.constant dense<0.000000e+00> : vector<16x128xf32>
    %77 = tpu.matmul %75, %76, %cst_41 {dimension_numbers = #tpu.dot_dimension_numbers<[1], [0], [0], [1], [0, 0, 1, 1], [], []>} : vector<16x128xbf16>, vector<128x128xbf16>, vector<16x128xf32> -> vector<16x128xf32>
    %78 = arith.addf %65, %77 : vector<16x128xf32>
    %c0_42 = arith.constant 0 : index
    %c0_43 = arith.constant 0 : index
    %79 = vector.load %arg2[%c0_42, %c0_43] : memref<16x128xf32, #tpu.memory_space<vmem>>, vector<16x128xf32>
    %cst_44 = arith.constant 1.42857146 : f32
    %80 = vector.broadcast %cst_44 : f32 to vector<16x128xf32>
    %81 = arith.subf %79, %80 : vector<16x128xf32>
    %cst_45 = arith.constant 1.750000e+00 : f32
    %82 = vector.broadcast %cst_45 : f32 to vector<16x128xf32>
    %83 = arith.mulf %81, %82 : vector<16x128xf32>
    %84 = arith.mulf %83, %83 : vector<16x128xf32>
    %cst_46 = arith.constant 0.000000e+00 : f32
    %85 = vector.broadcast %cst_46 : f32 to vector<16x128xf32>
    %86 = arith.subf %85, %84 : vector<16x128xf32>
    %87 = math.exp %86 : vector<16x128xf32>
    %88 = arith.truncf %87 : vector<16x128xf32> to vector<16x128xbf16>
    %c768 = arith.constant 768 : index
    %c0_47 = arith.constant 0 : index
    %89 = vector.load %arg3[%c768, %c0_47] : memref<1024x128xbf16, #tpu.memory_space<vmem>>, vector<128x128xbf16>
    %cst_48 = arith.constant dense<0.000000e+00> : vector<16x128xf32>
    %90 = tpu.matmul %88, %89, %cst_48 {dimension_numbers = #tpu.dot_dimension_numbers<[1], [0], [0], [1], [0, 0, 1, 1], [], []>} : vector<16x128xbf16>, vector<128x128xbf16>, vector<16x128xf32> -> vector<16x128xf32>
    %91 = arith.addf %78, %90 : vector<16x128xf32>
    %c0_49 = arith.constant 0 : index
    %c0_50 = arith.constant 0 : index
    %92 = vector.load %arg2[%c0_49, %c0_50] : memref<16x128xf32, #tpu.memory_space<vmem>>, vector<16x128xf32>
    %cst_51 = arith.constant 2.000000e+00 : f32
    %93 = vector.broadcast %cst_51 : f32 to vector<16x128xf32>
    %94 = arith.subf %92, %93 : vector<16x128xf32>
    %cst_52 = arith.constant 1.750000e+00 : f32
    %95 = vector.broadcast %cst_52 : f32 to vector<16x128xf32>
    %96 = arith.mulf %94, %95 : vector<16x128xf32>
    %97 = arith.mulf %96, %96 : vector<16x128xf32>
    %cst_53 = arith.constant 0.000000e+00 : f32
    %98 = vector.broadcast %cst_53 : f32 to vector<16x128xf32>
    %99 = arith.subf %98, %97 : vector<16x128xf32>
    %100 = math.exp %99 : vector<16x128xf32>
    %101 = arith.truncf %100 : vector<16x128xf32> to vector<16x128xbf16>
    %c896 = arith.constant 896 : index
    %c0_54 = arith.constant 0 : index
    %102 = vector.load %arg3[%c896, %c0_54] : memref<1024x128xbf16, #tpu.memory_space<vmem>>, vector<128x128xbf16>
    %cst_55 = arith.constant dense<0.000000e+00> : vector<16x128xf32>
    %103 = tpu.matmul %101, %102, %cst_55 {dimension_numbers = #tpu.dot_dimension_numbers<[1], [0], [0], [1], [0, 0, 1, 1], [], []>} : vector<16x128xbf16>, vector<128x128xbf16>, vector<16x128xf32> -> vector<16x128xf32>
    %104 = arith.addf %91, %103 : vector<16x128xf32>
    %c0_56 = arith.constant 0 : index
    %c0_57 = arith.constant 0 : index
    %105 = vector.load %arg4[%c0_56, %c0_57] : memref<16x128xf32, #tpu.memory_space<vmem>>, vector<16x128xf32>
    tpu.vector_store %arg4[%c0_56, %c0_57], %104 {strides = array<i32>} : memref<16x128xf32, #tpu.memory_space<vmem>>, vector<16x128xf32>,
    return
  }
  func.func @transform_0(%arg0: i32, %arg1: i32) -> (i32, i32) {
    %c0_i32 = arith.constant 0 : i32
    %c0_i32_0 = arith.constant 0 : i32
    return %arg0, %c0_i32 : i32, i32
  }
  func.func @transform_1(%arg0: i32, %arg1: i32) -> (i32, i32) {
    %c0_i32 = arith.constant 0 : i32
    %c0_i32_0 = arith.constant 0 : i32
    return %c0_i32, %arg1 : i32, i32
  }
  func.func @transform_2(%arg0: i32, %arg1: i32) -> (i32, i32) {
    %c0_i32 = arith.constant 0 : i32
    return %arg0, %arg1 : i32, i32
  }
}

</mosaic_0001>

<llo_original>
// kernel: tpu_custom_call.1
$region0: #{tpu_custom_call.1}
  #allocation0 [shape = 'u32[]', space=smem, size = 0x4, offset = 0x4, fixed_abs, tag = 'smem constant byte address 0x4 - core index']
  #allocation1 [shape = 'u32[144,128]{1,0:T(1,128)}', space=vmem, size = 0x12000, scoped, tag = 'internal scratch']
  %s0 = inlined_call_operand.hbm [shape: f32[16,128], index: 0, kind: input, shape index: {}]
  %s1 = inlined_call_operand.hbm [shape: bf16[1024,128], index: 1, kind: input, shape index: {}]
  %s2 = inlined_call_operand.hbm [shape: f32[16,128], index: 2, kind: output, shape index: {}]
  %s3 = sld [smem:[#allocation0]]
  $region26: #{tpu_custom_call.1} parent=0
    _
  %s5 = ssub.s32 1, %s3
  %s6 = scalar_select 0, %s5, %s3
  $region1: #{tpu_custom_call.1} parent=0
    #allocation2 [shape = 'u8[8192]{0}', space=vmem, size = 0x2000, scoped, tag = 'input window, operand 0, single buffered']
    #allocation3 [shape = 's32[1]{0}', space=sflag, size = 0x4, scoped, tag = 'scoped memory for tpu_custom_call.1']
    #allocation4 [shape = 's32[1]{0}', space=sflag, size = 0x4, scoped, tag = 'scoped memory for tpu_custom_call.1']
    #allocation5 [shape = 'u8[262144]{0}', space=vmem, size = 0x40000, scoped, tag = 'input window, operand 1, single buffered']
    #allocation6 [shape = 's32[1]{0}', space=sflag, size = 0x4, scoped, tag = 'scoped memory for tpu_custom_call.1']
    #allocation7 [shape = 'u8[8192]{0}', space=vmem, size = 0x2000, scoped, tag = 'output window, operand 0, single buffered']
    %7 = vsyncpa [#allocation3], 0
    %8 = vsyncpa [#allocation6], 0
    %9 = vsyncpa [#allocation4], 0
    // Predicated region
    $region2: #{tpu_custom_call.1} parent=1 // pred_check
      _
    $region3: #{tpu_custom_call.1} parent=1 // pred_check_branch
      %11 = sbr.rel (0) target = $region5
    $region4: #{tpu_custom_call.1} parent=1 // pred_region
      %s13 = ssub.s32 256, 256
      %14 = vsyncadd [#allocation3], %s13
      %s15 = sshll.u32 [#allocation2], 4
      %s16 = int_to_ptr.vmem [resolvable:$true] %s15
      %21 = dma.hbm_to_vmem [thread:$0]  %s0, 256, %s16, [#allocation3], 128, 128, 8
    $region5: #{tpu_custom_call.1} parent=1 // pred_fallthru
      _
    // Predicated region
    $region6: #{tpu_custom_call.1} parent=1 // pred_check
      _
    $region7: #{tpu_custom_call.1} parent=1 // pred_check_branch
      %23 = sbr.rel (0) target = $region9
    $region8: #{tpu_custom_call.1} parent=1 // pred_region
      %s25 = ssub.s32 8192, 8192
      %26 = vsyncadd [#allocation6], %s25
      %s27 = sshll.u32 [#allocation5], 4
      %s28 = int_to_ptr.vmem [resolvable:$true] %s27
      %33 = dma.hbm_to_vmem [thread:$0]  %s1, 8192, %s28, [#allocation6], 64, 64, 4
    $region9: #{tpu_custom_call.1} parent=1 // pred_fallthru
      _
    // Predicated region
    $region10: #{tpu_custom_call.1} parent=1 // pred_check
      _
    $region11: #{tpu_custom_call.1} parent=1 // pred_check_branch
      %35 = sbr.rel (0) target = $region13
    $region12: #{tpu_custom_call.1} parent=1 // pred_region
      %36 = dma.done [#allocation3], 256
    $region13: #{tpu_custom_call.1} parent=1 // pred_fallthru
      _
    // Predicated region
    $region14: #{tpu_custom_call.1} parent=1 // pred_check
      _
    $region15: #{tpu_custom_call.1} parent=1 // pred_check_branch
      %38 = sbr.rel (0) target = $region17
    $region16: #{tpu_custom_call.1} parent=1 // pred_region
      %39 = dma.done [#allocation6], 8192
    $region17: #{tpu_custom_call.1} parent=1 // pred_fallthru
      _
    %v41 = vld [vmem:[#allocation2] sm:$0xff]
    %v42 = vld [vmem:[#allocation2 + $0x8] sm:$0xff]
    %v43 = vsub.f32 %v41, -2.0
    %v44 = vsub.f32 %v42, -2.0
    %v45 = vmul.f32 %v43, 1.75
    %v46 = vmul.f32 %v44, 1.75
    %v47 = vmul.f32 %v45, %v45
    %v48 = vmul.f32 %v46, %v46
    %v49 = vsub.f32 0.0, %v47
    %v50 = vsub.f32 0.0, %v48
    %v51 = vmul.f32 %v49, 1.442695
    %v52 = vpow.pop %v51
    %v53 = vmul.f32 %v50, 1.442695
    %v54 = vpow.pop %v53
    %v55 = vpack.c.bf16 %v54, %v52
    %v56 = vld [vmem:[#allocation5] sm:$0xf]
    %v57 = vld [vmem:[#allocation5 + $0x4] sm:$0xf]
    %v58 = vld [vmem:[#allocation5 + $0x8] sm:$0xf]
    %v59 = vld [vmem:[#allocation5 + $0xc] sm:$0xf]
    %v60 = vld [vmem:[#allocation5 + $0x10] sm:$0xf]
    %v61 = vld [vmem:[#allocation5 + $0x14] sm:$0xf]
    %v62 = vld [vmem:[#allocation5 + $0x18] sm:$0xf]
    %v63 = vld [vmem:[#allocation5 + $0x1c] sm:$0xf]
    %v64 = vld [vmem:[#allocation5 + $0x20] sm:$0xf]
    %v65 = vld [vmem:[#allocation5 + $0x24] sm:$0xf]
    %v66 = vld [vmem:[#allocation5 + $0x28] sm:$0xf]
    %v67 = vld [vmem:[#allocation5 + $0x2c] sm:$0xf]
    %v68 = vld [vmem:[#allocation5 + $0x30] sm:$0xf]
    %v69 = vld [vmem:[#allocation5 + $0x34] sm:$0xf]
    %v70 = vld [vmem:[#allocation5 + $0x38] sm:$0xf]
    %v71 = vld [vmem:[#allocation5 + $0x3c] sm:$0xf]
    %v72 = vsub.f32 %v41, -1.4285715
    %v73 = vsub.f32 %v42, -1.4285715
    %v74 = vmul.f32 %v72, 1.75
    %v75 = vmul.f32 %v73, 1.75
    %v76 = vmul.f32 %v74, %v74
    %v77 = vmul.f32 %v75, %v75
    %v78 = vsub.f32 0.0, %v76
    %v79 = vsub.f32 0.0, %v77
    %v80 = vmul.f32 %v78, 1.442695
    %v81 = vpow.pop %v80
    %v82 = vmul.f32 %v79, 1.442695
    %v83 = vpow.pop %v82
    %v84 = vpack.c.bf16 %v83, %v81
    %v85 = vld [vmem:[#allocation5 + $0x40] sm:$0xf]
    %v86 = vld [vmem:[#allocation5 + $0x44] sm:$0xf]
    %v87 = vld [vmem:[#allocation5 + $0x48] sm:$0xf]
    %v88 = vld [vmem:[#allocation5 + $0x4c] sm:$0xf]
    %v89 = vld [vmem:[#allocation5 + $0x50] sm:$0xf]
    %v90 = vld [vmem:[#allocation5 + $0x54] sm:$0xf]
    %v91 = vld [vmem:[#allocation5 + $0x58] sm:$0xf]
    %v92 = vld [vmem:[#allocation5 + $0x5c] sm:$0xf]
    %v93 = vld [vmem:[#allocation5 + $0x60] sm:$0xf]
    %v94 = vld [vmem:[#allocation5 + $0x64] sm:$0xf]
    %v95 = vld [vmem:[#allocation5 + $0x68] sm:$0xf]
    %v96 = vld [vmem:[#allocation5 + $0x6c] sm:$0xf]
    %v97 = vld [vmem:[#allocation5 + $0x70] sm:$0xf]
    %v98 = vld [vmem:[#allocation5 + $0x74] sm:$0xf]
    %v99 = vld [vmem:[#allocation5 + $0x78] sm:$0xf]
    %v100 = vld [vmem:[#allocation5 + $0x7c] sm:$0xf]
    %v117 = vunpack.c.l.b16 %v85
    %v118 = vunpack.c.l.b16 %v86
    %v119 = vunpack.c.l.b16 %v87
    %v120 = vunpack.c.l.b16 %v88
    %v121 = vunpack.c.l.b16 %v89
    %v122 = vunpack.c.l.b16 %v90
    %v123 = vunpack.c.l.b16 %v91
    %v124 = vunpack.c.l.b16 %v92
    %v125 = vunpack.c.l.b16 %v93
    %v126 = vunpack.c.l.b16 %v94
    %v127 = vunpack.c.l.b16 %v95
    %v128 = vunpack.c.l.b16 %v96
    %v129 = vunpack.c.l.b16 %v97
    %v130 = vunpack.c.l.b16 %v98
    %v131 = vunpack.c.l.b16 %v99
    %v132 = vunpack.c.l.b16 %v100
    %v133 = vpack.c.b16 %v118, %v117
    %v134 = vpack.c.b16 %v120, %v119
    %v135 = vpack.c.b16 %v122, %v121
    %v136 = vpack.c.b16 %v124, %v123
    %v137 = vpack.c.b16 %v126, %v125
    %v138 = vpack.c.b16 %v128, %v127
    %v139 = vpack.c.b16 %v130, %v129
    %v140 = vpack.c.b16 %v132, %v131
    %149 = vmatprep.subr.bf16.mxu0 0
    %150 = vmatpush1.bf16.msra.mxu0 %v140
    %151 = vmatprep.subr.bf16.mxu0 0
    %152 = vmatpush1.bf16.msra.mxu0 %v139
    %153 = vmatprep.subr.bf16.mxu0 0
    %154 = vmatpush1.bf16.msra.mxu0 %v138
    %155 = vmatprep.subr.bf16.mxu0 0
    %156 = vmatpush1.bf16.msra.mxu0 %v137
    %157 = vmatprep.subr.bf16.mxu0 0
    %158 = vmatpush1.bf16.msra.mxu0 %v136
    %159 = vmatprep.subr.bf16.mxu0 0
    %160 = vmatpush1.bf16.msra.mxu0 %v135
    %161 = vmatprep.subr.bf16.mxu0 0
    %162 = vmatpush1.bf16.msra.mxu0 %v134
    %163 = vmatprep.subr.bf16.mxu0 0
    %164 = vmatpush1.bf16.msra.mxu0 %v133
    %165 = vmatprep.subr.bf16.mxu0 0
    %166 = vmatpush2.bf16.msra.mxu0 0
    %167 = vmatprep.subr.bf16.mxu0 0
    %168 = vmatpush2.bf16.msra.mxu0 0
    %169 = vmatprep.subr.bf16.mxu0 0
    %170 = vmatpush2.bf16.msra.mxu0 0
    %171 = vmatprep.subr.bf16.mxu0 0
    %172 = vmatpush2.bf16.msra.mxu0 0
    %173 = vmatprep.subr.bf16.mxu0 0
    %174 = vmatpush2.bf16.msra.mxu0 0
    %175 = vmatprep.subr.bf16.mxu0 0
    %176 = vmatpush2.bf16.msra.mxu0 0
    %177 = vmatprep.subr.bf16.mxu0 0
    %178 = vmatpush2.bf16.msra.mxu0 0
    %179 = vmatprep.subr.bf16.mxu0 0
    %180 = vmatpush2.bf16.msra.mxu0 0
    %181 = vmatprep.mubr.bf16.mxu0 0
    %182 = vmatmul.mubr.bf16.gmra.mxu0 %v84
    %v183 = vpop.f32.mrf.mxu0
    %v184 = vadd.f32 0.0, %v183
    %v185 = vpop.f32.mrf.mxu0
    %v186 = vpop.f32.mrf.mxu0
    %v187 = vadd.f32 0.0, %v186
    %v188 = vpop.f32.mrf.mxu0
    %189 = vdwg.mxu0
    %v206 = vunpack.c.l.b16 %v56
    %v207 = vunpack.c.l.b16 %v57
    %v208 = vunpack.c.l.b16 %v58
    %v209 = vunpack.c.l.b16 %v59
    %v210 = vunpack.c.l.b16 %v60
    %v211 = vunpack.c.l.b16 %v61
    %v212 = vunpack.c.l.b16 %v62
    %v213 = vunpack.c.l.b16 %v63
    %v214 = vunpack.c.l.b16 %v64
    %v215 = vunpack.c.l.b16 %v65
    %v216 = vunpack.c.l.b16 %v66
    %v217 = vunpack.c.l.b16 %v67
    %v218 = vunpack.c.l.b16 %v68
    %v219 = vunpack.c.l.b16 %v69
    %v220 = vunpack.c.l.b16 %v70
    %v221 = vunpack.c.l.b16 %v71
    %v222 = vpack.c.b16 %v207, %v206
    %v223 = vpack.c.b16 %v209, %v208
    %v224 = vpack.c.b16 %v211, %v210
    %v225 = vpack.c.b16 %v213, %v212
    %v226 = vpack.c.b16 %v215, %v214
    %v227 = vpack.c.b16 %v217, %v216
    %v228 = vpack.c.b16 %v219, %v218
    %v229 = vpack.c.b16 %v221, %v220
    %238 = vmatprep.subr.bf16.mxu0 0
    %239 = vmatpush1.bf16.msra.mxu0 %v229
    %240 = vmatprep.subr.bf16.mxu0 0
    %241 = vmatpush1.bf16.msra.mxu0 %v228
    %242 = vmatprep.subr.bf16.mxu0 0
    %243 = vmatpush1.bf16.msra.mxu0 %v227
    %244 = vmatprep.subr.bf16.mxu0 0
    %245 = vmatpush1.bf16.msra.mxu0 %v226
    %246 = vmatprep.subr.bf16.mxu0 0
    %247 = vmatpush1.bf16.msra.mxu0 %v225
    %248 = vmatprep.subr.bf16.mxu0 0
    %249 = vmatpush1.bf16.msra.mxu0 %v224
    %250 = vmatprep.subr.bf16.mxu0 0
    %251 = vmatpush1.bf16.msra.mxu0 %v223
    %252 = vmatprep.subr.bf16.mxu0 0
    %253 = vmatpush1.bf16.msra.mxu0 %v222
    %254 = vmatprep.subr.bf16.mxu0 0
    %255 = vmatpush2.bf16.msra.mxu0 0
    %256 = vmatprep.subr.bf16.mxu0 0
    %257 = vmatpush2.bf16.msra.mxu0 0
    %258 = vmatprep.subr.bf16.mxu0 0
    %259 = vmatpush2.bf16.msra.mxu0 0
    %260 = vmatprep.subr.bf16.mxu0 0
    %261 = vmatpush2.bf16.msra.mxu0 0
    %262 = vmatprep.subr.bf16.mxu0 0
    %263 = vmatpush2.bf16.msra.mxu0 0
    %264 = vmatprep.subr.bf16.mxu0 0
    %265 = vmatpush2.bf16.msra.mxu0 0
    %266 = vmatprep.subr.bf16.mxu0 0
    %267 = vmatpush2.bf16.msra.mxu0 0
    %268 = vmatprep.subr.bf16.mxu0 0
    %269 = vmatpush2.bf16.msra.mxu0 0
    %270 = vmatprep.mubr.bf16.mxu0 0
    %271 = vmatmul.mubr.bf16.gmra.mxu0 %v55
    %v272 = vpop.f32.mrf.mxu0
    %v273 = vadd.f32 %v184, %v272
    %v274 = vpop.f32.mrf.mxu0
    %v275 = vpop.f32.mrf.mxu0
    %v276 = vadd.f32 %v187, %v275
    %v277 = vpop.f32.mrf.mxu0
    %278 = vdwg.mxu0
    %v279 = vsub.f32 %v41, -0.85714287
    %v280 = vsub.f32 %v42, -0.85714287
    %v281 = vmul.f32 %v279, 1.75
    %v282 = vmul.f32 %v280, 1.75
    %v283 = vmul.f32 %v281, %v281
    %v284 = vmul.f32 %v282, %v282
    %v285 = vsub.f32 0.0, %v283
    %v286 = vsub.f32 0.0, %v284
    %v287 = vmul.f32 %v285, 1.442695
    %v288 = vpow.pop %v287
    %v289 = vmul.f32 %v286, 1.442695
    %v290 = vpow.pop %v289
    %v291 = vpack.c.bf16 %v290, %v288
    %v292 = vld [vmem:[#allocation5 + $0x80] sm:$0xf]
    %v293 = vld [vmem:[#allocation5 + $0x84] sm:$0xf]
    %v294 = vld [vmem:[#allocation5 + $0x88] sm:$0xf]
    %v295 = vld [vmem:[#allocation5 + $0x8c] sm:$0xf]
    %v296 = vld [vmem:[#allocation5 + $0x90] sm:$0xf]
    %v297 = vld [vmem:[#allocation5 + $0x94] sm:$0xf]
    %v298 = vld [vmem:[#allocation5 + $0x98] sm:$0xf]
    %v299 = vld [vmem:[#allocation5 + $0x9c] sm:$0xf]
    %v300 = vld [vmem:[#allocation5 + $0xa0] sm:$0xf]
    %v301 = vld [vmem:[#allocation5 + $0xa4] sm:$0xf]
    %v302 = vld [vmem:[#allocation5 + $0xa8] sm:$0xf]
    %v303 = vld [vmem:[#allocation5 + $0xac] sm:$0xf]
    %v304 = vld [vmem:[#allocation5 + $0xb0] sm:$0xf]
    %v305 = vld [vmem:[#allocation5 + $0xb4] sm:$0xf]
    %v306 = vld [vmem:[#allocation5 + $0xb8] sm:$0xf]
    %v307 = vld [vmem:[#allocation5 + $0xbc] sm:$0xf]
    %v324 = vunpack.c.l.b16 %v292
    %v325 = vunpack.c.l.b16 %v293
    %v326 = vunpack.c.l.b16 %v294
    %v327 = vunpack.c.l.b16 %v295
    %v328 = vunpack.c.l.b16 %v296
    %v329 = vunpack.c.l.b16 %v297
    %v330 = vunpack.c.l.b16 %v298
    %v331 = vunpack.c.l.b16 %v299
    %v332 = vunpack.c.l.b16 %v300
    %v333 = vunpack.c.l.b16 %v301
    %v334 = vunpack.c.l.b16 %v302
    %v335 = vunpack.c.l.b16 %v303
    %v336 = vunpack.c.l.b16 %v304
    %v337 = vunpack.c.l.b16 %v305
    %v338 = vunpack.c.l.b16 %v306
    %v339 = vunpack.c.l.b16 %v307
    %v340 = vpack.c.b16 %v325, %v324
    %v341 = vpack.c.b16 %v327, %v326
    %v342 = vpack.c.b16 %v329, %v328
    %v343 = vpack.c.b16 %v331, %v330
    %v344 = vpack.c.b16 %v333, %v332
    %v345 = vpack.c.b16 %v335, %v334
    %v346 = vpack.c.b16 %v337, %v336
    %v347 = vpack.c.b16 %v339, %v338
    %356 = vmatprep.subr.bf16.mxu0 0
    %357 = vmatpush1.bf16.msra.mxu0 %v347
    %358 = vmatprep.subr.bf16.mxu0 0
    %359 = vmatpush1.bf16.msra.mxu0 %v346
    %360 = vmatprep.subr.bf16.mxu0 0
    %361 = vmatpush1.bf16.msra.mxu0 %v345
    %362 = vmatprep.subr.bf16.mxu0 0
    %363 = vmatpush1.bf16.msra.mxu0 %v344
    %364 = vmatprep.subr.bf16.mxu0 0
    %365 = vmatpush1.bf16.msra.mxu0 %v343
    %366 = vmatprep.subr.bf16.mxu0 0
    %367 = vmatpush1.bf16.msra.mxu0 %v342
    %368 = vmatprep.subr.bf16.mxu0 0
    %369 = vmatpush1.bf16.msra.mxu0 %v341
    %370 = vmatprep.subr.bf16.mxu0 0
    %371 = vmatpush1.bf16.msra.mxu0 %v340
    %372 = vmatprep.subr.bf16.mxu0 0
    %373 = vmatpush2.bf16.msra.mxu0 0
    %374 = vmatprep.subr.bf16.mxu0 0
    %375 = vmatpush2.bf16.msra.mxu0 0
    %376 = vmatprep.subr.bf16.mxu0 0
    %377 = vmatpush2.bf16.msra.mxu0 0
    %378 = vmatprep.subr.bf16.mxu0 0
    %379 = vmatpush2.bf16.msra.mxu0 0
    %380 = vmatprep.subr.bf16.mxu0 0
    %381 = vmatpush2.bf16.msra.mxu0 0
    %382 = vmatprep.subr.bf16.mxu0 0
    %383 = vmatpush2.bf16.msra.mxu0 0
    %384 = vmatprep.subr.bf16.mxu0 0
    %385 = vmatpush2.bf16.msra.mxu0 0
    %386 = vmatprep.subr.bf16.mxu0 0
    %387 = vmatpush2.bf16.msra.mxu0 0
    %388 = vmatprep.mubr.bf16.mxu0 0
    %389 = vmatmul.mubr.bf16.gmra.mxu0 %v291
    %v390 = vpop.f32.mrf.mxu0
    %v391 = vadd.f32 0.0, %v390
    %v392 = vpop.f32.mrf.mxu0
    %v393 = vpop.f32.mrf.mxu0
    %v394 = vadd.f32 0.0, %v393
    %v395 = vpop.f32.mrf.mxu0
    %396 = vdwg.mxu0
    %v397 = vadd.f32 %v273, %v391
    %v398 = vadd.f32 %v276, %v394
    %v399 = vsub.f32 %v41, -0.2857143
    %v400 = vsub.f32 %v42, -0.2857143
    %v401 = vmul.f32 %v399, 1.75
    %v402 = vmul.f32 %v400, 1.75
    %v403 = vmul.f32 %v401, %v401
    %v404 = vmul.f32 %v402, %v402
    %v405 = vsub.f32 0.0, %v403
    %v406 = vsub.f32 0.0, %v404
    %v407 = vmul.f32 %v405, 1.442695
    %v408 = vpow.pop %v407
    %v409 = vmul.f32 %v406, 1.442695
    %v410 = vpow.pop %v409
    %v411 = vpack.c.bf16 %v410, %v408
    %v412 = vld [vmem:[#allocation5 + $0xc0] sm:$0xf]
    %v413 = vld [vmem:[#allocation5 + $0xc4] sm:$0xf]
    %v414 = vld [vmem:[#allocation5 + $0xc8] sm:$0xf]
    %v415 = vld [vmem:[#allocation5 + $0xcc] sm:$0xf]
    %v416 = vld [vmem:[#allocation5 + $0xd0] sm:$0xf]
    %v417 = vld [vmem:[#allocation5 + $0xd4] sm:$0xf]
    %v418 = vld [vmem:[#allocation5 + $0xd8] sm:$0xf]
    %v419 = vld [vmem:[#allocation5 + $0xdc] sm:$0xf]
    %v420 = vld [vmem:[#allocation5 + $0xe0] sm:$0xf]
    %v421 = vld [vmem:[#allocation5 + $0xe4] sm:$0xf]
    %v422 = vld [vmem:[#allocation5 + $0xe8] sm:$0xf]
    %v423 = vld [vmem:[#allocation5 + $0xec] sm:$0xf]
    %v424 = vld [vmem:[#allocation5 + $0xf0] sm:$0xf]
    %v425 = vld [vmem:[#allocation5 + $0xf4] sm:$0xf]
    %v426 = vld [vmem:[#allocation5 + $0xf8] sm:$0xf]
    %v427 = vld [vmem:[#allocation5 + $0xfc] sm:$0xf]
    %v444 = vunpack.c.l.b16 %v412
    %v445 = vunpack.c.l.b16 %v413
    %v446 = vunpack.c.l.b16 %v414
    %v447 = vunpack.c.l.b16 %v415
    %v448 = vunpack.c.l.b16 %v416
    %v449 = vunpack.c.l.b16 %v417
    %v450 = vunpack.c.l.b16 %v418
    %v451 = vunpack.c.l.b16 %v419
    %v452 = vunpack.c.l.b16 %v420
    %v453 = vunpack.c.l.b16 %v421
    %v454 = vunpack.c.l.b16 %v422
    %v455 = vunpack.c.l.b16 %v423
    %v456 = vunpack.c.l.b16 %v424
    %v457 = vunpack.c.l.b16 %v425
    %v458 = vunpack.c.l.b16 %v426
    %v459 = vunpack.c.l.b16 %v427
    %v460 = vpack.c.b16 %v445, %v444
    %v461 = vpack.c.b16 %v447, %v446
    %v462 = vpack.c.b16 %v449, %v448
    %v463 = vpack.c.b16 %v451, %v450
    %v464 = vpack.c.b16 %v453, %v452
    %v465 = vpack.c.b16 %v455, %v454
    %v466 = vpack.c.b16 %v457, %v456
    %v467 = vpack.c.b16 %v459, %v458
    %476 = vmatprep.subr.bf16.mxu0 0
    %477 = vmatpush1.bf16.msra.mxu0 %v467
    %478 = vmatprep.subr.bf16.mxu0 0
    %479 = vmatpush1.bf16.msra.mxu0 %v466
    %480 = vmatprep.subr.bf16.mxu0 0
    %481 = vmatpush1.bf16.msra.mxu0 %v465
    %482 = vmatprep.subr.bf16.mxu0 0
    %483 = vmatpush1.bf16.msra.mxu0 %v464
    %484 = vmatprep.subr.bf16.mxu0 0
    %485 = vmatpush1.bf16.msra.mxu0 %v463
    %486 = vmatprep.subr.bf16.mxu0 0
    %487 = vmatpush1.bf16.msra.mxu0 %v462
    %488 = vmatprep.subr.bf16.mxu0 0
    %489 = vmatpush1.bf16.msra.mxu0 %v461
    %490 = vmatprep.subr.bf16.mxu0 0
    %491 = vmatpush1.bf16.msra.mxu0 %v460
    %492 = vmatprep.subr.bf16.mxu0 0
    %493 = vmatpush2.bf16.msra.mxu0 0
    %494 = vmatprep.subr.bf16.mxu0 0
    %495 = vmatpush2.bf16.msra.mxu0 0
    %496 = vmatprep.subr.bf16.mxu0 0
    %497 = vmatpush2.bf16.msra.mxu0 0
    %498 = vmatprep.subr.bf16.mxu0 0
    %499 = vmatpush2.bf16.msra.mxu0 0
    %500 = vmatprep.subr.bf16.mxu0 0
    %501 = vmatpush2.bf16.msra.mxu0 0
    %502 = vmatprep.subr.bf16.mxu0 0
    %503 = vmatpush2.bf16.msra.mxu0 0
    %504 = vmatprep.subr.bf16.mxu0 0
    %505 = vmatpush2.bf16.msra.mxu0 0
    %506 = vmatprep.subr.bf16.mxu0 0
    %507 = vmatpush2.bf16.msra.mxu0 0
    %508 = vmatprep.mubr.bf16.mxu0 0
    %509 = vmatmul.mubr.bf16.gmra.mxu0 %v411
    %v510 = vpop.f32.mrf.mxu0
    %v511 = vadd.f32 0.0, %v510
    %v512 = vpop.f32.mrf.mxu0
    %v513 = vpop.f32.mrf.mxu0
    %v514 = vadd.f32 0.0, %v513
    %v515 = vpop.f32.mrf.mxu0
    %516 = vdwg.mxu0
    %v517 = vadd.f32 %v397, %v511
    %v518 = vadd.f32 %v398, %v514
    %v519 = vsub.f32 %v41, 0.2857143
    %v520 = vsub.f32 %v42, 0.2857143
    %v521 = vmul.f32 %v519, 1.75
    %v522 = vmul.f32 %v520, 1.75
    %v523 = vmul.f32 %v521, %v521
    %v524 = vmul.f32 %v522, %v522
    %v525 = vsub.f32 0.0, %v523
    %v526 = vsub.f32 0.0, %v524
    %v527 = vmul.f32 %v525, 1.442695
    %v528 = vpow.pop %v527
    %v529 = vmul.f32 %v526, 1.442695
    %v530 = vpow.pop %v529
    %v531 = vpack.c.bf16 %v530, %v528
    %v532 = vld [vmem:[#allocation5 + $0x100] sm:$0xf]
    %v533 = vld [vmem:[#allocation5 + $0x104] sm:$0xf]
    %v534 = vld [vmem:[#allocation5 + $0x108] sm:$0xf]
    %v535 = vld [vmem:[#allocation5 + $0x10c] sm:$0xf]
    %v536 = vld [vmem:[#allocation5 + $0x110] sm:$0xf]
    %v537 = vld [vmem:[#allocation5 + $0x114] sm:$0xf]
    %v538 = vld [vmem:[#allocation5 + $0x118] sm:$0xf]
    %v539 = vld [vmem:[#allocation5 + $0x11c] sm:$0xf]
    %v540 = vld [vmem:[#allocation5 + $0x120] sm:$0xf]
    %v541 = vld [vmem:[#allocation5 + $0x124] sm:$0xf]
    %v542 = vld [vmem:[#allocation5 + $0x128] sm:$0xf]
    %v543 = vld [vmem:[#allocation5 + $0x12c] sm:$0xf]
    %v544 = vld [vmem:[#allocation5 + $0x130] sm:$0xf]
    %v545 = vld [vmem:[#allocation5 + $0x134] sm:$0xf]
    %v546 = vld [vmem:[#allocation5 + $0x138] sm:$0xf]
    %v547 = vld [vmem:[#allocation5 + $0x13c] sm:$0xf]
    %v564 = vunpack.c.l.b16 %v532
    %v565 = vunpack.c.l.b16 %v533
    %v566 = vunpack.c.l.b16 %v534
    %v567 = vunpack.c.l.b16 %v535
    %v568 = vunpack.c.l.b16 %v536
    %v569 = vunpack.c.l.b16 %v537
    %v570 = vunpack.c.l.b16 %v538
    %v571 = vunpack.c.l.b16 %v539
    %v572 = vunpack.c.l.b16 %v540
    %v573 = vunpack.c.l.b16 %v541
    %v574 = vunpack.c.l.b16 %v542
    %v575 = vunpack.c.l.b16 %v543
    %v576 = vunpack.c.l.b16 %v544
    %v577 = vunpack.c.l.b16 %v545
    %v578 = vunpack.c.l.b16 %v546
    %v579 = vunpack.c.l.b16 %v547
    %v580 = vpack.c.b16 %v565, %v564
    %v581 = vpack.c.b16 %v567, %v566
    %v582 = vpack.c.b16 %v569, %v568
    %v583 = vpack.c.b16 %v571, %v570
    %v584 = vpack.c.b16 %v573, %v572
    %v585 = vpack.c.b16 %v575, %v574
    %v586 = vpack.c.b16 %v577, %v576
    %v587 = vpack.c.b16 %v579, %v578
    %596 = vmatprep.subr.bf16.mxu0 0
    %597 = vmatpush1.bf16.msra.mxu0 %v587
    %598 = vmatprep.subr.bf16.mxu0 0
    %599 = vmatpush1.bf16.msra.mxu0 %v586
    %600 = vmatprep.subr.bf16.mxu0 0
    %601 = vmatpush1.bf16.msra.mxu0 %v585
    %602 = vmatprep.subr.bf16.mxu0 0
    %603 = vmatpush1.bf16.msra.mxu0 %v584
    %604 = vmatprep.subr.bf16.mxu0 0
    %605 = vmatpush1.bf16.msra.mxu0 %v583
    %606 = vmatprep.subr.bf16.mxu0 0
    %607 = vmatpush1.bf16.msra.mxu0 %v582
    %608 = vmatprep.subr.bf16.mxu0 0
    %609 = vmatpush1.bf16.msra.mxu0 %v581
    %610 = vmatprep.subr.bf16.mxu0 0
    %611 = vmatpush1.bf16.msra.mxu0 %v580
    %612 = vmatprep.subr.bf16.mxu0 0
    %613 = vmatpush2.bf16.msra.mxu0 0
    %614 = vmatprep.subr.bf16.mxu0 0
    %615 = vmatpush2.bf16.msra.mxu0 0
    %616 = vmatprep.subr.bf16.mxu0 0
    %617 = vmatpush2.bf16.msra.mxu0 0
    %618 = vmatprep.subr.bf16.mxu0 0
    %619 = vmatpush2.bf16.msra.mxu0 0
    %620 = vmatprep.subr.bf16.mxu0 0
    %621 = vmatpush2.bf16.msra.mxu0 0
    %622 = vmatprep.subr.bf16.mxu0 0
    %623 = vmatpush2.bf16.msra.mxu0 0
    %624 = vmatprep.subr.bf16.mxu0 0
    %625 = vmatpush2.bf16.msra.mxu0 0
    %626 = vmatprep.subr.bf16.mxu0 0
    %627 = vmatpush2.bf16.msra.mxu0 0
    %628 = vmatprep.mubr.bf16.mxu0 0
    %629 = vmatmul.mubr.bf16.gmra.mxu0 %v531
    %v630 = vpop.f32.mrf.mxu0
    %v631 = vadd.f32 0.0, %v630
    %v632 = vpop.f32.mrf.mxu0
    %v633 = vpop.f32.mrf.mxu0
    %v634 = vadd.f32 0.0, %v633
    %v635 = vpop.f32.mrf.mxu0
    %636 = vdwg.mxu0
    %v637 = vadd.f32 %v517, %v631
    %v638 = vadd.f32 %v518, %v634
    %v639 = vsub.f32 %v41, 0.85714287
    %v640 = vsub.f32 %v42, 0.85714287
    %v641 = vmul.f32 %v639, 1.75
    %v642 = vmul.f32 %v640, 1.75
    %v643 = vmul.f32 %v641, %v641
    %v644 = vmul.f32 %v642, %v642
    %v645 = vsub.f32 0.0, %v643
    %v646 = vsub.f32 0.0, %v644
    %v647 = vmul.f32 %v645, 1.442695
    %v648 = vpow.pop %v647
    %v649 = vmul.f32 %v646, 1.442695
    %v650 = vpow.pop %v649
    %v651 = vpack.c.bf16 %v650, %v648
    %v652 = vld [vmem:[#allocation5 + $0x140] sm:$0xf]
    %v653 = vld [vmem:[#allocation5 + $0x144] sm:$0xf]
    %v654 = vld [vmem:[#allocation5 + $0x148] sm:$0xf]
    %v655 = vld [vmem:[#allocation5 + $0x14c] sm:$0xf]
    %v656 = vld [vmem:[#allocation5 + $0x150] sm:$0xf]
    %v657 = vld [vmem:[#allocation5 + $0x154] sm:$0xf]
    %v658 = vld [vmem:[#allocation5 + $0x158] sm:$0xf]
    %v659 = vld [vmem:[#allocation5 + $0x15c] sm:$0xf]
    %v660 = vld [vmem:[#allocation5 + $0x160] sm:$0xf]
    %v661 = vld [vmem:[#allocation5 + $0x164] sm:$0xf]
    %v662 = vld [vmem:[#allocation5 + $0x168] sm:$0xf]
    %v663 = vld [vmem:[#allocation5 + $0x16c] sm:$0xf]
    %v664 = vld [vmem:[#allocation5 + $0x170] sm:$0xf]
    %v665 = vld [vmem:[#allocation5 + $0x174] sm:$0xf]
    %v666 = vld [vmem:[#allocation5 + $0x178] sm:$0xf]
    %v667 = vld [vmem:[#allocation5 + $0x17c] sm:$0xf]
    %v684 = vunpack.c.l.b16 %v652
    %v685 = vunpack.c.l.b16 %v653
    %v686 = vunpack.c.l.b16 %v654
    %v687 = vunpack.c.l.b16 %v655
    %v688 = vunpack.c.l.b16 %v656
    %v689 = vunpack.c.l.b16 %v657
    %v690 = vunpack.c.l.b16 %v658
    %v691 = vunpack.c.l.b16 %v659
    %v692 = vunpack.c.l.b16 %v660
    %v693 = vunpack.c.l.b16 %v661
    %v694 = vunpack.c.l.b16 %v662
    %v695 = vunpack.c.l.b16 %v663
    %v696 = vunpack.c.l.b16 %v664
    %v697 = vunpack.c.l.b16 %v665
    %v698 = vunpack.c.l.b16 %v666
    %v699 = vunpack.c.l.b16 %v667
    %v700 = vpack.c.b16 %v685, %v684
    %v701 = vpack.c.b16 %v687, %v686
    %v702 = vpack.c.b16 %v689, %v688
    %v703 = vpack.c.b16 %v691, %v690
    %v704 = vpack.c.b16 %v693, %v692
    %v705 = vpack.c.b16 %v695, %v694
    %v706 = vpack.c.b16 %v697, %v696
    %v707 = vpack.c.b16 %v699, %v698
    %716 = vmatprep.subr.bf16.mxu0 0
    %717 = vmatpush1.bf16.msra.mxu0 %v707
    %718 = vmatprep.subr.bf16.mxu0 0
    %719 = vmatpush1.bf16.msra.mxu0 %v706
    %720 = vmatprep.subr.bf16.mxu0 0
    %721 = vmatpush1.bf16.msra.mxu0 %v705
    %722 = vmatprep.subr.bf16.mxu0 0
    %723 = vmatpush1.bf16.msra.mxu0 %v704
    %724 = vmatprep.subr.bf16.mxu0 0
    %725 = vmatpush1.bf16.msra.mxu0 %v703
    %726 = vmatprep.subr.bf16.mxu0 0
    %727 = vmatpush1.bf16.msra.mxu0 %v702
    %728 = vmatprep.subr.bf16.mxu0 0
    %729 = vmatpush1.bf16.msra.mxu0 %v701
    %730 = vmatprep.subr.bf16.mxu0 0
    %731 = vmatpush1.bf16.msra.mxu0 %v700
    %732 = vmatprep.subr.bf16.mxu0 0
    %733 = vmatpush2.bf16.msra.mxu0 0
    %734 = vmatprep.subr.bf16.mxu0 0
    %735 = vmatpush2.bf16.msra.mxu0 0
    %736 = vmatprep.subr.bf16.mxu0 0
    %737 = vmatpush2.bf16.msra.mxu0 0
    %738 = vmatprep.subr.bf16.mxu0 0
    %739 = vmatpush2.bf16.msra.mxu0 0
    %740 = vmatprep.subr.bf16.mxu0 0
    %741 = vmatpush2.bf16.msra.mxu0 0
    %742 = vmatprep.subr.bf16.mxu0 0
    %743 = vmatpush2.bf16.msra.mxu0 0
    %744 = vmatprep.subr.bf16.mxu0 0
    %745 = vmatpush2.bf16.msra.mxu0 0
    %746 = vmatprep.subr.bf16.mxu0 0
    %747 = vmatpush2.bf16.msra.mxu0 0
    %748 = vmatprep.mubr.bf16.mxu0 0
    %749 = vmatmul.mubr.bf16.gmra.mxu0 %v651
    %v750 = vpop.f32.mrf.mxu0
    %v751 = vadd.f32 0.0, %v750
    %v752 = vpop.f32.mrf.mxu0
    %v753 = vpop.f32.mrf.mxu0
    %v754 = vadd.f32 0.0, %v753
    %v755 = vpop.f32.mrf.mxu0
    %756 = vdwg.mxu0
    %v757 = vadd.f32 %v637, %v751
    %v758 = vadd.f32 %v638, %v754
    %v759 = vsub.f32 %v41, 1.4285715
    %v760 = vsub.f32 %v42, 1.4285715
    %v761 = vmul.f32 %v759, 1.75
    %v762 = vmul.f32 %v760, 1.75
    %v763 = vmul.f32 %v761, %v761
    %v764 = vmul.f32 %v762, %v762
    %v765 = vsub.f32 0.0, %v763
    %v766 = vsub.f32 0.0, %v764
    %v767 = vmul.f32 %v765, 1.442695
    %v768 = vpow.pop %v767
    %v769 = vmul.f32 %v766, 1.442695
    %v770 = vpow.pop %v769
    %v771 = vpack.c.bf16 %v770, %v768
    %v772 = vld [vmem:[#allocation5 + $0x180] sm:$0xf]
    %v773 = vld [vmem:[#allocation5 + $0x184] sm:$0xf]
    %v774 = vld [vmem:[#allocation5 + $0x188] sm:$0xf]
    %v775 = vld [vmem:[#allocation5 + $0x18c] sm:$0xf]
    %v776 = vld [vmem:[#allocation5 + $0x190] sm:$0xf]
    %v777 = vld [vmem:[#allocation5 + $0x194] sm:$0xf]
    %v778 = vld [vmem:[#allocation5 + $0x198] sm:$0xf]
    %v779 = vld [vmem:[#allocation5 + $0x19c] sm:$0xf]
    %v780 = vld [vmem:[#allocation5 + $0x1a0] sm:$0xf]
    %v781 = vld [vmem:[#allocation5 + $0x1a4] sm:$0xf]
    %v782 = vld [vmem:[#allocation5 + $0x1a8] sm:$0xf]
    %v783 = vld [vmem:[#allocation5 + $0x1ac] sm:$0xf]
    %v784 = vld [vmem:[#allocation5 + $0x1b0] sm:$0xf]
    %v785 = vld [vmem:[#allocation5 + $0x1b4] sm:$0xf]
    %v786 = vld [vmem:[#allocation5 + $0x1b8] sm:$0xf]
    %v787 = vld [vmem:[#allocation5 + $0x1bc] sm:$0xf]
    %v804 = vunpack.c.l.b16 %v772
    %v805 = vunpack.c.l.b16 %v773
    %v806 = vunpack.c.l.b16 %v774
    %v807 = vunpack.c.l.b16 %v775
    %v808 = vunpack.c.l.b16 %v776
    %v809 = vunpack.c.l.b16 %v777
    %v810 = vunpack.c.l.b16 %v778
    %v811 = vunpack.c.l.b16 %v779
    %v812 = vunpack.c.l.b16 %v780
    %v813 = vunpack.c.l.b16 %v781
    %v814 = vunpack.c.l.b16 %v782
    %v815 = vunpack.c.l.b16 %v783
    %v816 = vunpack.c.l.b16 %v784
    %v817 = vunpack.c.l.b16 %v785
    %v818 = vunpack.c.l.b16 %v786
    %v819 = vunpack.c.l.b16 %v787
    %v820 = vpack.c.b16 %v805, %v804
    %v821 = vpack.c.b16 %v807, %v806
    %v822 = vpack.c.b16 %v809, %v808
    %v823 = vpack.c.b16 %v811, %v810
    %v824 = vpack.c.b16 %v813, %v812
    %v825 = vpack.c.b16 %v815, %v814
    %v826 = vpack.c.b16 %v817, %v816
    %v827 = vpack.c.b16 %v819, %v818
    %836 = vmatprep.subr.bf16.mxu0 0
    %837 = vmatpush1.bf16.msra.mxu0 %v827
    %838 = vmatprep.subr.bf16.mxu0 0
    %839 = vmatpush1.bf16.msra.mxu0 %v826
    %840 = vmatprep.subr.bf16.mxu0 0
    %841 = vmatpush1.bf16.msra.mxu0 %v825
    %842 = vmatprep.subr.bf16.mxu0 0
    %843 = vmatpush1.bf16.msra.mxu0 %v824
    %844 = vmatprep.subr.bf16.mxu0 0
    %845 = vmatpush1.bf16.msra.mxu0 %v823
    %846 = vmatprep.subr.bf16.mxu0 0
    %847 = vmatpush1.bf16.msra.mxu0 %v822
    %848 = vmatprep.subr.bf16.mxu0 0
    %849 = vmatpush1.bf16.msra.mxu0 %v821
    %850 = vmatprep.subr.bf16.mxu0 0
    %851 = vmatpush1.bf16.msra.mxu0 %v820
    %852 = vmatprep.subr.bf16.mxu0 0
    %853 = vmatpush2.bf16.msra.mxu0 0
    %854 = vmatprep.subr.bf16.mxu0 0
    %855 = vmatpush2.bf16.msra.mxu0 0
    %856 = vmatprep.subr.bf16.mxu0 0
    %857 = vmatpush2.bf16.msra.mxu0 0
    %858 = vmatprep.subr.bf16.mxu0 0
    %859 = vmatpush2.bf16.msra.mxu0 0
    %860 = vmatprep.subr.bf16.mxu0 0
    %861 = vmatpush2.bf16.msra.mxu0 0
    %862 = vmatprep.subr.bf16.mxu0 0
    %863 = vmatpush2.bf16.msra.mxu0 0
    %864 = vmatprep.subr.bf16.mxu0 0
    %865 = vmatpush2.bf16.msra.mxu0 0
    %866 = vmatprep.subr.bf16.mxu0 0
    %867 = vmatpush2.bf16.msra.mxu0 0
    %868 = vmatprep.mubr.bf16.mxu0 0
    %869 = vmatmul.mubr.bf16.gmra.mxu0 %v771
    %v870 = vpop.f32.mrf.mxu0
    %v871 = vadd.f32 0.0, %v870
    %v872 = vpop.f32.mrf.mxu0
    %v873 = vpop.f32.mrf.mxu0
    %v874 = vadd.f32 0.0, %v873
    %v875 = vpop.f32.mrf.mxu0
    %876 = vdwg.mxu0
    %v877 = vadd.f32 %v757, %v871
    %v878 = vadd.f32 %v758, %v874
    %v879 = vsub.f32 %v41, 2.0
    %v880 = vsub.f32 %v42, 2.0
    %v881 = vmul.f32 %v879, 1.75
    %v882 = vmul.f32 %v880, 1.75
    %v883 = vmul.f32 %v881, %v881
    %v884 = vmul.f32 %v882, %v882
    %v885 = vsub.f32 0.0, %v883
    %v886 = vsub.f32 0.0, %v884
    %v887 = vmul.f32 %v885, 1.442695
    %v888 = vpow.pop %v887
    %v889 = vmul.f32 %v886, 1.442695
    %v890 = vpow.pop %v889
    %v891 = vpack.c.bf16 %v890, %v888
    %v892 = vld [vmem:[#allocation5 + $0x1c0] sm:$0xf]
    %v893 = vld [vmem:[#allocation5 + $0x1c4] sm:$0xf]
    %v894 = vld [vmem:[#allocation5 + $0x1c8] sm:$0xf]
    %v895 = vld [vmem:[#allocation5 + $0x1cc] sm:$0xf]
    %v896 = vld [vmem:[#allocation5 + $0x1d0] sm:$0xf]
    %v897 = vld [vmem:[#allocation5 + $0x1d4] sm:$0xf]
    %v898 = vld [vmem:[#allocation5 + $0x1d8] sm:$0xf]
    %v899 = vld [vmem:[#allocation5 + $0x1dc] sm:$0xf]
    %v900 = vld [vmem:[#allocation5 + $0x1e0] sm:$0xf]
    %v901 = vld [vmem:[#allocation5 + $0x1e4] sm:$0xf]
    %v902 = vld [vmem:[#allocation5 + $0x1e8] sm:$0xf]
    %v903 = vld [vmem:[#allocation5 + $0x1ec] sm:$0xf]
    %v904 = vld [vmem:[#allocation5 + $0x1f0] sm:$0xf]
    %v905 = vld [vmem:[#allocation5 + $0x1f4] sm:$0xf]
    %v906 = vld [vmem:[#allocation5 + $0x1f8] sm:$0xf]
    %v907 = vld [vmem:[#allocation5 + $0x1fc] sm:$0xf]
    %v924 = vunpack.c.l.b16 %v892
    %v925 = vunpack.c.l.b16 %v893
    %v926 = vunpack.c.l.b16 %v894
    %v927 = vunpack.c.l.b16 %v895
    %v928 = vunpack.c.l.b16 %v896
    %v929 = vunpack.c.l.b16 %v897
    %v930 = vunpack.c.l.b16 %v898
    %v931 = vunpack.c.l.b16 %v899
    %v932 = vunpack.c.l.b16 %v900
    %v933 = vunpack.c.l.b16 %v901
    %v934 = vunpack.c.l.b16 %v902
    %v935 = vunpack.c.l.b16 %v903
    %v936 = vunpack.c.l.b16 %v904
    %v937 = vunpack.c.l.b16 %v905
    %v938 = vunpack.c.l.b16 %v906
    %v939 = vunpack.c.l.b16 %v907
    %v940 = vpack.c.b16 %v925, %v924
    %v941 = vpack.c.b16 %v927, %v926
    %v942 = vpack.c.b16 %v929, %v928
    %v943 = vpack.c.b16 %v931, %v930
    %v944 = vpack.c.b16 %v933, %v932
    %v945 = vpack.c.b16 %v935, %v934
    %v946 = vpack.c.b16 %v937, %v936
    %v947 = vpack.c.b16 %v939, %v938
    %956 = vmatprep.subr.bf16.mxu0 0
    %957 = vmatpush1.bf16.msra.mxu0 %v947
    %958 = vmatprep.subr.bf16.mxu0 0
    %959 = vmatpush1.bf16.msra.mxu0 %v946
    %960 = vmatprep.subr.bf16.mxu0 0
    %961 = vmatpush1.bf16.msra.mxu0 %v945
    %962 = vmatprep.subr.bf16.mxu0 0
    %963 = vmatpush1.bf16.msra.mxu0 %v944
    %964 = vmatprep.subr.bf16.mxu0 0
    %965 = vmatpush1.bf16.msra.mxu0 %v943
    %966 = vmatprep.subr.bf16.mxu0 0
    %967 = vmatpush1.bf16.msra.mxu0 %v942
    %968 = vmatprep.subr.bf16.mxu0 0
    %969 = vmatpush1.bf16.msra.mxu0 %v941
    %970 = vmatprep.subr.bf16.mxu0 0
    %971 = vmatpush1.bf16.msra.mxu0 %v940
    %972 = vmatprep.subr.bf16.mxu0 0
    %973 = vmatpush2.bf16.msra.mxu0 0
    %974 = vmatprep.subr.bf16.mxu0 0
    %975 = vmatpush2.bf16.msra.mxu0 0
    %976 = vmatprep.subr.bf16.mxu0 0
    %977 = vmatpush2.bf16.msra.mxu0 0
    %978 = vmatprep.subr.bf16.mxu0 0
    %979 = vmatpush2.bf16.msra.mxu0 0
    %980 = vmatprep.subr.bf16.mxu0 0
    %981 = vmatpush2.bf16.msra.mxu0 0
    %982 = vmatprep.subr.bf16.mxu0 0
    %983 = vmatpush2.bf16.msra.mxu0 0
    %984 = vmatprep.subr.bf16.mxu0 0
    %985 = vmatpush2.bf16.msra.mxu0 0
    %986 = vmatprep.subr.bf16.mxu0 0
    %987 = vmatpush2.bf16.msra.mxu0 0
    %988 = vmatprep.mubr.bf16.mxu0 0
    %989 = vmatmul.mubr.bf16.gmra.mxu0 %v891
    %v990 = vpop.f32.mrf.mxu0
    %v991 = vadd.f32 0.0, %v990
    %v992 = vpop.f32.mrf.mxu0
    %v993 = vpop.f32.mrf.mxu0
    %v994 = vadd.f32 0.0, %v993
    %v995 = vpop.f32.mrf.mxu0
    %996 = vdwg.mxu0
    %v997 = vadd.f32 %v877, %v991
    %v998 = vadd.f32 %v878, %v994
    %999 = vst [vmem:[#allocation7] sm:$0xff] %v997
    %1000 = vst [vmem:[#allocation7 + $0x8] sm:$0xff] %v998
    // Predicated region
    $region18: #{tpu_custom_call.1} parent=1 // pred_check
      _
    $region19: #{tpu_custom_call.1} parent=1 // pred_check_branch
      %1002 = sbr.rel (0) target = $region21
    $region20: #{tpu_custom_call.1} parent=1 // pred_region
      %s1004 = ssub.s32 256, 256
      %1005 = vsyncadd [#allocation4], %s1004
      %s1006 = sshll.u32 [#allocation7], 4
      %s1007 = int_to_ptr.vmem [resolvable:$true] %s1006
      %1012 = dma.vmem_to_hbm [thread:$0]  %s1007, 256, %s2, [#allocation4], 128, 128, 8
    $region21: #{tpu_custom_call.1} parent=1 // pred_fallthru
      _
    // Predicated region
    $region22: #{tpu_custom_call.1} parent=1 // pred_check
      _
    $region23: #{tpu_custom_call.1} parent=1 // pred_check_branch
      %1014 = sbr.rel (0) target = $region25
    $region24: #{tpu_custom_call.1} parent=1 // pred_region
      %1015 = dma.done [#allocation4], 256
    $region25: #{tpu_custom_call.1} parent=1 // pred_fallthru
      _
    %1016 = vsyncpa [#allocation3], 1
    %1017 = vsyncpa [#allocation6], 1
    %1018 = vsyncpa [#allocation4], 1

</llo_original>
